<compile_context>
chip_gen: v7x
topology: tpu7x:2x2x1
jax: 0.10.0
libtpu: 0.0.40
codegen_flags: <defaults>
</compile_context>

<pallas_src>
import functools

import jax
import jax.numpy as jnp
from jax.experimental import pallas as pl
from jax.experimental.pallas import tpu as pltpu

K_PAD = 8          # per-branch padded feature width (3 -> 8)
OUT_PAD = 8        # padded output width (3 -> 8)
ROW_ALIGN = 16     # bf16 sublane packing


def _cdiv(a, b):
    return -(-a // b)


def _round_up(x, m):
    return _cdiv(x, m) * m


def _pad_last(x, target):
    if x.shape[-1] >= target:
        return x
    pad = [(0, 0)] * x.ndim
    pad[-1] = (0, target - x.shape[-1])
    return jnp.pad(x, pad)


def _pad_first(x, target):
    if x.shape[0] >= target:
        return x
    pad = [(0, 0)] * x.ndim
    pad[0] = (0, target - x.shape[0])
    return jnp.pad(x, pad)


def _rnn_fused_kernel(
    x_ref,                      # (tm, 2*K_PAD)  bf16   [state_pad | input_pad]
    wsi_ref, bsi_ref,           # (2*K_PAD, 128) bf16, (1, 128) f32
    w0_ref, b0_ref,             # (128, 256) bf16, (1, 256) f32
    w1_ref, b1_ref,             # (256, 128) bf16, (1, 128) f32
    w2_ref, b2_ref,             # (128, 64)  bf16, (1, 64)  f32
    w3_ref, b3_ref,             # (64, OUT_PAD) bf16, (1, OUT_PAD) f32
    out_ref,                    # (tm, OUT_PAD) f32
):
    f32 = jnp.float32
    bf16 = jnp.bfloat16

    # Fused state/input branches: X @ blockdiag(ws, wi) == [relu(s@ws) | relu(i@wi)]
    h = jnp.maximum(
        jnp.dot(x_ref[...], wsi_ref[...], preferred_element_type=f32)
        + bsi_ref[...], 0.0).astype(bf16)
    # layer_0 .. layer_2 (ReLU), f32 accumulate, bf16 back to the MXU.
    h = jnp.maximum(
        jnp.dot(h, w0_ref[...], preferred_element_type=f32) + b0_ref[...],
        0.0).astype(bf16)
    h = jnp.maximum(
        jnp.dot(h, w1_ref[...], preferred_element_type=f32) + b1_ref[...],
        0.0).astype(bf16)
    h = jnp.maximum(
        jnp.dot(h, w2_ref[...], preferred_element_type=f32) + b2_ref[...],
        0.0).astype(bf16)
    # layer_3 + tanh; padded columns are tanh(0)=0 and sliced off outside.
    out_ref[...] = jnp.tanh(
        jnp.dot(h, w3_ref[...], preferred_element_type=f32) + b3_ref[...]
    ).astype(out_ref.dtype)


@functools.partial(jax.jit, static_argnames=("tile_m",))
def rnn_net_2_forward(state, inp, params, *, tile_m=1024):
    """Fused Pallas forward of RNN_net_2.

    state:  (B, state_dim) f32
    inp:    (B, input_dim) f32
    params: dict of (in, out)-shaped weights ws, wi, w0, w1, w2, w3 and biases
            bs, bi, b0, b1, b2, b3 (PyTorch layout transposed to x @ W + b).
    returns (B, out_dim) f32
    """
    B = state.shape[0]
    state_dim = state.shape[1]
    input_dim = inp.shape[1]
    out_dim = params["w3"].shape[1]
    bf16 = jnp.bfloat16
    f32 = jnp.float32

    # ---- wrapper-side layout plumbing --------------------------------------
    # Fused input operand: [state | input], each branch padded to K_PAD lanes.
    x = jnp.concatenate(
        [_pad_last(state.astype(f32), K_PAD), _pad_last(inp.astype(f32), K_PAD)],
        axis=-1)                                                   # (B, 16)

    # Block-diagonal branch weight: rows 0..K_PAD-1 -> state_net (cols 0..63),
    # rows K_PAD..2K_PAD-1 -> input_net (cols 64..127).  Matches torch.cat order.
    w_si = jnp.zeros((2 * K_PAD, 128), f32)
    w_si = w_si.at[:state_dim, :64].set(params["ws"].astype(f32))
    w_si = w_si.at[K_PAD:K_PAD + input_dim, 64:].set(params["wi"].astype(f32))
    b_si = jnp.concatenate(
        [params["bs"].astype(f32), params["bi"].astype(f32)]).reshape(1, 128)

    w0 = params["w0"].astype(f32)                                  # (128, 256)
    b0 = params["b0"].astype(f32).reshape(1, 256)
    w1 = params["w1"].astype(f32)                                  # (256, 128)
    b1 = params["b1"].astype(f32).reshape(1, 128)
    w2 = params["w2"].astype(f32)                                  # (128, 64)
    b2 = params["b2"].astype(f32).reshape(1, 64)
    w3 = _pad_last(params["w3"].astype(f32), OUT_PAD)              # (64, 8)
    b3 = _pad_last(params["b3"].astype(f32).reshape(1, out_dim), OUT_PAD)

    # bf16 for everything the MXU eats; biases stay f32 (added post-accumulate).
    x = x.astype(bf16)
    w_si, w0, w1, w2, w3 = (w.astype(bf16) for w in (w_si, w0, w1, w2, w3))

    # ---- balanced batch tiling ----------------------------------------------
    num_tiles = _cdiv(B, tile_m)
    if B >= 256 and num_tiles < 2:
        num_tiles = 2            # give both v7x TensorCores work at larger B
    tm = _round_up(_cdiv(B, num_tiles), ROW_ALIGN)
    b_pad = num_tiles * tm
    x = _pad_first(x, b_pad)

    # advisory cost estimate (padded problem, bf16 operands / f32 output)
    flops_per_row = 2 * (2 * K_PAD * 128 + 128 * 256 + 256 * 128
                         + 128 * 64 + 64 * OUT_PAD)
    weight_bytes = 2 * (2 * K_PAD * 128 + 128 * 256 + 256 * 128
                        + 128 * 64 + 64 * OUT_PAD) \
        + 4 * (128 + 256 + 128 + 64 + OUT_PAD)
    cost = pl.CostEstimate(
        flops=flops_per_row * b_pad,
        transcendentals=b_pad * OUT_PAD,
        bytes_accessed=b_pad * 2 * K_PAD * 2 + weight_bytes + b_pad * OUT_PAD * 4,
    )

    grid_spec = pltpu.PrefetchScalarGridSpec(
        num_scalar_prefetch=0,
        grid=(num_tiles,),
        in_specs=[
            pl.BlockSpec((tm, 2 * K_PAD), lambda i: (i, 0)),   # fused input tile
            pl.BlockSpec((2 * K_PAD, 128), lambda i: (0, 0)),  # w_si (resident)
            pl.BlockSpec((1, 128), lambda i: (0, 0)),          # b_si
            pl.BlockSpec((128, 256), lambda i: (0, 0)),        # w0
            pl.BlockSpec((1, 256), lambda i: (0, 0)),          # b0
            pl.BlockSpec((256, 128), lambda i: (0, 0)),        # w1
            pl.BlockSpec((1, 128), lambda i: (0, 0)),          # b1
            pl.BlockSpec((128, 64), lambda i: (0, 0)),         # w2
            pl.BlockSpec((1, 64), lambda i: (0, 0)),           # b2
            pl.BlockSpec((64, OUT_PAD), lambda i: (0, 0)),     # w3 (8-col pad)
            pl.BlockSpec((1, OUT_PAD), lambda i: (0, 0)),      # b3 (8-col pad)
        ],
        out_specs=pl.BlockSpec((tm, OUT_PAD), lambda i: (i, 0)),
    )

    out_padded = pl.pallas_call(
        _rnn_fused_kernel,
        out_shape=jax.ShapeDtypeStruct((b_pad, OUT_PAD), jnp.float32),
        grid_spec=grid_spec,
        compiler_params=pltpu.CompilerParams(
            dimension_semantics=("parallel",)),
        cost_estimate=cost,
    )(x, w_si, b_si, w0, b0, w1, b1, w2, b2, w3, b3)

    return out_padded[:B, :out_dim]


# ----------------------------- parameter init -------------------------------
def _linear_init(key, in_dim, out_dim):
    """PyTorch nn.Linear default init: U(-1/sqrt(fan_in), 1/sqrt(fan_in))."""
    kw, kb = jax.random.split(key)
    bound = 1.0 / (in_dim ** 0.5)
    w = jax.random.uniform(kw, (in_dim, out_dim), jnp.float32, -bound, bound)
    b = jax.random.uniform(kb, (out_dim,), jnp.float32, -bound, bound)
    return w, b


def init_rnn_net_2_params(key, state_dim=3, input_dim=3, out_dim=3):
    keys = jax.random.split(key, 6)
    ws, bs = _linear_init(keys[0], state_dim, 64)
    wi, bi = _linear_init(keys[1], input_dim, 64)
    w0, b0 = _linear_init(keys[2], 128, 256)
    w1, b1 = _linear_init(keys[3], 256, 128)
    w2, b2 = _linear_init(keys[4], 128, 64)
    w3, b3 = _linear_init(keys[5], 64, out_dim)
    return dict(ws=ws, bs=bs, wi=wi, bi=bi, w0=w0, b0=b0,
                w1=w1, b1=b1, w2=w2, b2=b2, w3=w3, b3=b3)


def rnn_net_2_reference(state, inp, p):
    """Pure-JAX f32 reference matching the PyTorch forward."""
    hs = jax.nn.relu(state @ p["ws"] + p["bs"])
    hi = jax.nn.relu(inp @ p["wi"] + p["bi"])
    h = jnp.concatenate([hs, hi], axis=1)
    h0 = jax.nn.relu(h @ p["w0"] + p["b0"])
    h1 = jax.nn.relu(h0 @ p["w1"] + p["b1"])
    h2 = jax.nn.relu(h1 @ p["w2"] + p["b2"])
    return jnp.tanh(h2 @ p["w3"] + p["b3"])


if __name__ == "__main__":
    key = jax.random.PRNGKey(0)
    k_params, k_state, k_input = jax.random.split(key, 3)

    batch = 64
    state_dim = input_dim = out_dim = 3

    params = init_rnn_net_2_params(k_params, state_dim, input_dim, out_dim)
    train_state_data = jax.random.normal(k_state, (batch, state_dim), jnp.float32)
    train_input_data = jax.random.normal(k_input, (batch, input_dim), jnp.float32)

    out = rnn_net_2_forward(train_state_data, train_input_data, params)
    out = jax.block_until_ready(out)

    ref = rnn_net_2_reference(train_state_data, train_input_data, params)
    assert out.shape == (batch, out_dim)
    # bf16 matmuls with f32 accumulation -> relaxed tolerance vs. f32 reference.
    err = float(jnp.max(jnp.abs(out - ref)))
    assert jnp.allclose(out, ref, atol=2e-2, rtol=2e-2), err

    print("KERNEL_OK")
</pallas_src>

<mosaic_0001>
module attributes {stable_mosaic.version = 11 : i64} {
  func.func @_rnn_fused_kernel(%arg0: i32, %arg1: memref<64x16xbf16, #tpu.memory_space<vmem>>, %arg2: memref<16x128xbf16, #tpu.memory_space<vmem>>, %arg3: memref<1x128xf32, #tpu.memory_space<vmem>>, %arg4: memref<128x256xbf16, #tpu.memory_space<vmem>>, %arg5: memref<1x256xf32, #tpu.memory_space<vmem>>, %arg6: memref<256x128xbf16, #tpu.memory_space<vmem>>, %arg7: memref<1x128xf32, #tpu.memory_space<vmem>>, %arg8: memref<128x64xbf16, #tpu.memory_space<vmem>>, %arg9: memref<1x64xf32, #tpu.memory_space<vmem>>, %arg10: memref<64x8xbf16, #tpu.memory_space<vmem>>, %arg11: memref<1x8xf32, #tpu.memory_space<vmem>>, %arg12: memref<64x8xf32, #tpu.memory_space<vmem>>) attributes {dimension_semantics = [#tpu.dimension_semantics<parallel>], iteration_bounds = array<i64: 1>, scalar_prefetch = 0 : i64, scratch_operands = 0 : i64, tpu.core_type = #tpu.core_type<tc>, window_params = [{transform_indices = @transform_0, window_bounds = array<i64: 64, 16>}, {pipeline_mode = #tpu.pipeline_mode<synchronous>, transform_indices = @transform_1, window_bounds = array<i64: 16, 128>}, {pipeline_mode = #tpu.pipeline_mode<synchronous>, transform_indices = @transform_2, window_bounds = array<i64: 1, 128>}, {pipeline_mode = #tpu.pipeline_mode<synchronous>, transform_indices = @transform_3, window_bounds = array<i64: 128, 256>}, {pipeline_mode = #tpu.pipeline_mode<synchronous>, transform_indices = @transform_4, window_bounds = array<i64: 1, 256>}, {pipeline_mode = #tpu.pipeline_mode<synchronous>, transform_indices = @transform_5, window_bounds = array<i64: 256, 128>}, {pipeline_mode = #tpu.pipeline_mode<synchronous>, transform_indices = @transform_6, window_bounds = array<i64: 1, 128>}, {pipeline_mode = #tpu.pipeline_mode<synchronous>, transform_indices = @transform_7, window_bounds = array<i64: 128, 64>}, {pipeline_mode = #tpu.pipeline_mode<synchronous>, transform_indices = @transform_8, window_bounds = array<i64: 1, 64>}, {pipeline_mode = #tpu.pipeline_mode<synchronous>, transform_indices = @transform_9, window_bounds = array<i64: 64, 8>}, {pipeline_mode = #tpu.pipeline_mode<synchronous>, transform_indices = @transform_10, window_bounds = array<i64: 1, 8>}, {transform_indices = @transform_11, window_bounds = array<i64: 64, 8>}]} {
    %c0 = arith.constant 0 : index
    %c0_0 = arith.constant 0 : index
    %0 = vector.load %arg1[%c0, %c0_0] : memref<64x16xbf16, #tpu.memory_space<vmem>>, vector<64x16xbf16>
    %c0_1 = arith.constant 0 : index
    %c0_2 = arith.constant 0 : index
    %1 = vector.load %arg2[%c0_1, %c0_2] : memref<16x128xbf16, #tpu.memory_space<vmem>>, vector<16x128xbf16>
    %cst = arith.constant dense<0.000000e+00> : vector<64x128xf32>
    %2 = tpu.matmul %0, %1, %cst {dimension_numbers = #tpu.dot_dimension_numbers<[1], [0], [0], [1], [0, 0, 1, 1], [], []>} : vector<64x16xbf16>, vector<16x128xbf16>, vector<64x128xf32> -> vector<64x128xf32>
    %c0_3 = arith.constant 0 : index
    %c0_4 = arith.constant 0 : index
    %3 = vector.load %arg3[%c0_3, %c0_4] : memref<1x128xf32, #tpu.memory_space<vmem>>, vector<1x128xf32>
    %4 = vector.broadcast %3 : vector<1x128xf32> to vector<64x128xf32>
    %5 = arith.addf %2, %4 : vector<64x128xf32>
    %cst_5 = arith.constant 0.000000e+00 : f32
    %6 = vector.broadcast %cst_5 : f32 to vector<64x128xf32>
    %7 = arith.maximumf %5, %6 : vector<64x128xf32>
    %8 = arith.truncf %7 : vector<64x128xf32> to vector<64x128xbf16>
    %c0_6 = arith.constant 0 : index
    %c0_7 = arith.constant 0 : index
    %9 = vector.load %arg4[%c0_6, %c0_7] : memref<128x256xbf16, #tpu.memory_space<vmem>>, vector<128x256xbf16>
    %cst_8 = arith.constant dense<0.000000e+00> : vector<64x256xf32>
    %10 = tpu.matmul %8, %9, %cst_8 {dimension_numbers = #tpu.dot_dimension_numbers<[1], [0], [0], [1], [0, 0, 1, 1], [], []>} : vector<64x128xbf16>, vector<128x256xbf16>, vector<64x256xf32> -> vector<64x256xf32>
    %c0_9 = arith.constant 0 : index
    %c0_10 = arith.constant 0 : index
    %11 = vector.load %arg5[%c0_9, %c0_10] : memref<1x256xf32, #tpu.memory_space<vmem>>, vector<1x256xf32>
    %12 = vector.broadcast %11 : vector<1x256xf32> to vector<64x256xf32>
    %13 = arith.addf %10, %12 : vector<64x256xf32>
    %cst_11 = arith.constant 0.000000e+00 : f32
    %14 = vector.broadcast %cst_11 : f32 to vector<64x256xf32>
    %15 = arith.maximumf %13, %14 : vector<64x256xf32>
    %16 = arith.truncf %15 : vector<64x256xf32> to vector<64x256xbf16>
    %c0_12 = arith.constant 0 : index
    %c0_13 = arith.constant 0 : index
    %17 = vector.load %arg6[%c0_12, %c0_13] : memref<256x128xbf16, #tpu.memory_space<vmem>>, vector<256x128xbf16>
    %cst_14 = arith.constant dense<0.000000e+00> : vector<64x128xf32>
    %18 = tpu.matmul %16, %17, %cst_14 {dimension_numbers = #tpu.dot_dimension_numbers<[1], [0], [0], [1], [0, 0, 1, 1], [], []>} : vector<64x256xbf16>, vector<256x128xbf16>, vector<64x128xf32> -> vector<64x128xf32>
    %c0_15 = arith.constant 0 : index
    %c0_16 = arith.constant 0 : index
    %19 = vector.load %arg7[%c0_15, %c0_16] : memref<1x128xf32, #tpu.memory_space<vmem>>, vector<1x128xf32>
    %20 = vector.broadcast %19 : vector<1x128xf32> to vector<64x128xf32>
    %21 = arith.addf %18, %20 : vector<64x128xf32>
    %cst_17 = arith.constant 0.000000e+00 : f32
    %22 = vector.broadcast %cst_17 : f32 to vector<64x128xf32>
    %23 = arith.maximumf %21, %22 : vector<64x128xf32>
    %24 = arith.truncf %23 : vector<64x128xf32> to vector<64x128xbf16>
    %c0_18 = arith.constant 0 : index
    %c0_19 = arith.constant 0 : index
    %25 = vector.load %arg8[%c0_18, %c0_19] : memref<128x64xbf16, #tpu.memory_space<vmem>>, vector<128x64xbf16>
    %cst_20 = arith.constant dense<0.000000e+00> : vector<64x64xf32>
    %26 = tpu.matmul %24, %25, %cst_20 {dimension_numbers = #tpu.dot_dimension_numbers<[1], [0], [0], [1], [0, 0, 1, 1], [], []>} : vector<64x128xbf16>, vector<128x64xbf16>, vector<64x64xf32> -> vector<64x64xf32>
    %c0_21 = arith.constant 0 : index
    %c0_22 = arith.constant 0 : index
    %27 = vector.load %arg9[%c0_21, %c0_22] : memref<1x64xf32, #tpu.memory_space<vmem>>, vector<1x64xf32>
    %28 = vector.broadcast %27 : vector<1x64xf32> to vector<64x64xf32>
    %29 = arith.addf %26, %28 : vector<64x64xf32>
    %cst_23 = arith.constant 0.000000e+00 : f32
    %30 = vector.broadcast %cst_23 : f32 to vector<64x64xf32>
    %31 = arith.maximumf %29, %30 : vector<64x64xf32>
    %32 = arith.truncf %31 : vector<64x64xf32> to vector<64x64xbf16>
    %c0_24 = arith.constant 0 : index
    %c0_25 = arith.constant 0 : index
    %33 = vector.load %arg10[%c0_24, %c0_25] : memref<64x8xbf16, #tpu.memory_space<vmem>>, vector<64x8xbf16>
    %cst_26 = arith.constant dense<0.000000e+00> : vector<64x8xf32>
    %34 = tpu.matmul %32, %33, %cst_26 {dimension_numbers = #tpu.dot_dimension_numbers<[1], [0], [0], [1], [0, 0, 1, 1], [], []>} : vector<64x64xbf16>, vector<64x8xbf16>, vector<64x8xf32> -> vector<64x8xf32>
    %c0_27 = arith.constant 0 : index
    %c0_28 = arith.constant 0 : index
    %35 = vector.load %arg11[%c0_27, %c0_28] : memref<1x8xf32, #tpu.memory_space<vmem>>, vector<1x8xf32>
    %36 = vector.broadcast %35 : vector<1x8xf32> to vector<64x8xf32>
    %37 = arith.addf %34, %36 : vector<64x8xf32>
    %38 = math.tanh %37 : vector<64x8xf32>
    %c0_29 = arith.constant 0 : index
    %c0_30 = arith.constant 0 : index
    %39 = vector.load %arg12[%c0_29, %c0_30] : memref<64x8xf32, #tpu.memory_space<vmem>>, vector<64x8xf32>
    tpu.vector_store %arg12[%c0_29, %c0_30], %38 {strides = array<i32>} : memref<64x8xf32, #tpu.memory_space<vmem>>, vector<64x8xf32>,
    return
  }
  func.func @transform_0(%arg0: i32) -> (i32, i32) {
    %c0_i32 = arith.constant 0 : i32
    %c0_i32_0 = arith.constant 0 : i32
    return %arg0, %c0_i32 : i32, i32
  }
  func.func @transform_1(%arg0: i32) -> (i32, i32) {
    %c0_i32 = arith.constant 0 : i32
    %c0_i32_0 = arith.constant 0 : i32
    %c0_i32_1 = arith.constant 0 : i32
    return %c0_i32, %c0_i32_0 : i32, i32
  }
  func.func @transform_2(%arg0: i32) -> (i32, i32) {
    %c0_i32 = arith.constant 0 : i32
    %c0_i32_0 = arith.constant 0 : i32
    %c0_i32_1 = arith.constant 0 : i32
    return %c0_i32, %c0_i32_0 : i32, i32
  }
  func.func @transform_3(%arg0: i32) -> (i32, i32) {
    %c0_i32 = arith.constant 0 : i32
    %c0_i32_0 = arith.constant 0 : i32
    %c0_i32_1 = arith.constant 0 : i32
    return %c0_i32, %c0_i32_0 : i32, i32
  }
  func.func @transform_4(%arg0: i32) -> (i32, i32) {
    %c0_i32 = arith.constant 0 : i32
    %c0_i32_0 = arith.constant 0 : i32
    %c0_i32_1 = arith.constant 0 : i32
    return %c0_i32, %c0_i32_0 : i32, i32
  }
  func.func @transform_5(%arg0: i32) -> (i32, i32) {
    %c0_i32 = arith.constant 0 : i32
    %c0_i32_0 = arith.constant 0 : i32
    %c0_i32_1 = arith.constant 0 : i32
    return %c0_i32, %c0_i32_0 : i32, i32
  }
  func.func @transform_6(%arg0: i32) -> (i32, i32) {
    %c0_i32 = arith.constant 0 : i32
    %c0_i32_0 = arith.constant 0 : i32
    %c0_i32_1 = arith.constant 0 : i32
    return %c0_i32, %c0_i32_0 : i32, i32
  }
  func.func @transform_7(%arg0: i32) -> (i32, i32) {
    %c0_i32 = arith.constant 0 : i32
    %c0_i32_0 = arith.constant 0 : i32
    %c0_i32_1 = arith.constant 0 : i32
    return %c0_i32, %c0_i32_0 : i32, i32
  }
  func.func @transform_8(%arg0: i32) -> (i32, i32) {
    %c0_i32 = arith.constant 0 : i32
    %c0_i32_0 = arith.constant 0 : i32
    %c0_i32_1 = arith.constant 0 : i32
    return %c0_i32, %c0_i32_0 : i32, i32
  }
  func.func @transform_9(%arg0: i32) -> (i32, i32) {
    %c0_i32 = arith.constant 0 : i32
    %c0_i32_0 = arith.constant 0 : i32
    %c0_i32_1 = arith.constant 0 : i32
    return %c0_i32, %c0_i32_0 : i32, i32
  }
  func.func @transform_10(%arg0: i32) -> (i32, i32) {
    %c0_i32 = arith.constant 0 : i32
    %c0_i32_0 = arith.constant 0 : i32
    %c0_i32_1 = arith.constant 0 : i32
    return %c0_i32, %c0_i32_0 : i32, i32
  }
  func.func @transform_11(%arg0: i32) -> (i32, i32) {
    %c0_i32 = arith.constant 0 : i32
    %c0_i32_0 = arith.constant 0 : i32
    return %arg0, %c0_i32 : i32, i32
  }
}

</mosaic_0001>

<llo_original>
// kernel: rnn_net_2_forward.1
$region0: #{rnn_net_2_forward.1}
  #allocation0 [shape = 'u32[]', space=smem, size = 0x4, offset = 0x4, fixed_abs, tag = 'smem constant byte address 0x4 - core index']
  #allocation1 [shape = 'u32[144,128]{1,0:T(1,128)}', space=vmem, size = 0x12000, scoped, tag = 'internal scratch']
  %s0 = inlined_call_operand.vmem [shape: bf16[64,16], index: 0, kind: input, shape index: {}]
  %s1 = inlined_call_operand.vmem [shape: bf16[16,128], index: 1, kind: input, shape index: {}]
  %s2 = inlined_call_operand.vmem [shape: f32[1,128], index: 2, kind: input, shape index: {}]
  %s3 = inlined_call_operand.vmem [shape: bf16[128,256], index: 3, kind: input, shape index: {}]
  %s4 = inlined_call_operand.vmem [shape: f32[1,256], index: 4, kind: input, shape index: {}]
  %s5 = inlined_call_operand.vmem [shape: bf16[256,128], index: 5, kind: input, shape index: {}]
  %s6 = inlined_call_operand.vmem [shape: f32[1,128], index: 6, kind: input, shape index: {}]
  %s7 = inlined_call_operand.vmem [shape: bf16[128,64], index: 7, kind: input, shape index: {}]
  %s8 = inlined_call_operand.vmem [shape: f32[1,64], index: 8, kind: input, shape index: {}]
  %s9 = inlined_call_operand.vmem [shape: bf16[64,8], index: 9, kind: input, shape index: {}]
  %s10 = inlined_call_operand.vmem [shape: f32[1,8], index: 10, kind: input, shape index: {}]
  %s11 = inlined_call_operand.vmem [shape: f32[64,8], index: 11, kind: output, shape index: {}]
  %s12 = sld [smem:[#allocation0]]
  $region54: #{rnn_net_2_forward.1} parent=0
    _
  %s14 = ssub.s32 1, %s12
  %s15 = scalar_select 0, %s14, %s12
  // Predicated region
  $region2: #{rnn_net_2_forward.1} parent=0 // pred_check
    _
  $region3: #{rnn_net_2_forward.1} parent=0 // pred_check_branch
    %17 = sbr.rel (0) target = $region5
  $region4: #{rnn_net_2_forward.1} parent=0 // pred_region
    _
  $region5: #{rnn_net_2_forward.1} parent=0 // pred_fallthru
    _
  // Predicated region
  $region6: #{rnn_net_2_forward.1} parent=0 // pred_check
    _
  $region7: #{rnn_net_2_forward.1} parent=0 // pred_check_branch
    %19 = sbr.rel (0) target = $region9
  $region8: #{rnn_net_2_forward.1} parent=0 // pred_region
    _
  $region9: #{rnn_net_2_forward.1} parent=0 // pred_fallthru
    _
  // Predicated region
  $region10: #{rnn_net_2_forward.1} parent=0 // pred_check
    _
  $region11: #{rnn_net_2_forward.1} parent=0 // pred_check_branch
    %21 = sbr.rel (0) target = $region13
  $region12: #{rnn_net_2_forward.1} parent=0 // pred_region
    _
  $region13: #{rnn_net_2_forward.1} parent=0 // pred_fallthru
    _
  // Predicated region
  $region14: #{rnn_net_2_forward.1} parent=0 // pred_check
    _
  $region15: #{rnn_net_2_forward.1} parent=0 // pred_check_branch
    %23 = sbr.rel (0) target = $region17
  $region16: #{rnn_net_2_forward.1} parent=0 // pred_region
    _
  $region17: #{rnn_net_2_forward.1} parent=0 // pred_fallthru
    _
  // Predicated region
  $region18: #{rnn_net_2_forward.1} parent=0 // pred_check
    _
  $region19: #{rnn_net_2_forward.1} parent=0 // pred_check_branch
    %25 = sbr.rel (0) target = $region21
  $region20: #{rnn_net_2_forward.1} parent=0 // pred_region
    _
  $region21: #{rnn_net_2_forward.1} parent=0 // pred_fallthru
    _
  // Predicated region
  $region22: #{rnn_net_2_forward.1} parent=0 // pred_check
    _
  $region23: #{rnn_net_2_forward.1} parent=0 // pred_check_branch
    %27 = sbr.rel (0) target = $region25
  $region24: #{rnn_net_2_forward.1} parent=0 // pred_region
    _
  $region25: #{rnn_net_2_forward.1} parent=0 // pred_fallthru
    _
  // Predicated region
  $region26: #{rnn_net_2_forward.1} parent=0 // pred_check
    _
  $region27: #{rnn_net_2_forward.1} parent=0 // pred_check_branch
    %29 = sbr.rel (0) target = $region29
  $region28: #{rnn_net_2_forward.1} parent=0 // pred_region
    _
  $region29: #{rnn_net_2_forward.1} parent=0 // pred_fallthru
    _
  // Predicated region
  $region30: #{rnn_net_2_forward.1} parent=0 // pred_check
    _
  $region31: #{rnn_net_2_forward.1} parent=0 // pred_check_branch
    %31 = sbr.rel (0) target = $region33
  $region32: #{rnn_net_2_forward.1} parent=0 // pred_region
    _
  $region33: #{rnn_net_2_forward.1} parent=0 // pred_fallthru
    _
  // Predicated region
  $region34: #{rnn_net_2_forward.1} parent=0 // pred_check
    _
  $region35: #{rnn_net_2_forward.1} parent=0 // pred_check_branch
    %33 = sbr.rel (0) target = $region37
  $region36: #{rnn_net_2_forward.1} parent=0 // pred_region
    _
  $region37: #{rnn_net_2_forward.1} parent=0 // pred_fallthru
    _
  // Predicated region
  $region38: #{rnn_net_2_forward.1} parent=0 // pred_check
    _
  $region39: #{rnn_net_2_forward.1} parent=0 // pred_check_branch
    %35 = sbr.rel (0) target = $region41
  $region40: #{rnn_net_2_forward.1} parent=0 // pred_region
    _
  $region41: #{rnn_net_2_forward.1} parent=0 // pred_fallthru
    _
  // Predicated region
  $region42: #{rnn_net_2_forward.1} parent=0 // pred_check
    _
  $region43: #{rnn_net_2_forward.1} parent=0 // pred_check_branch
    %37 = sbr.rel (0) target = $region45
  $region44: #{rnn_net_2_forward.1} parent=0 // pred_region
    _
  $region45: #{rnn_net_2_forward.1} parent=0 // pred_fallthru
    _
  %v39 = vld [vmem:[%s0] sm:$0xf]
  %v40 = vld [vmem:[%s0 + $0x4] sm:$0xf]
  %v41 = vld [vmem:[%s0 + $0x8] sm:$0xf]
  %v42 = vld [vmem:[%s0 + $0xc] sm:$0xf]
  %v43 = vld [vmem:[%s0 + $0x10] sm:$0xf]
  %v44 = vld [vmem:[%s0 + $0x14] sm:$0xf]
  %v45 = vld [vmem:[%s0 + $0x18] sm:$0xf]
  %v46 = vld [vmem:[%s0 + $0x1c] sm:$0xf]
  %v47 = vld [vmem:[%s1] sm:$0xf]
  %v48 = vld [vmem:[%s1 + $0x4] sm:$0xf]
  %v49 = vld [vmem:[%s2] sm:$0x1]
  %v51 = vlaneseq
  %v52 = vshrl.u32 %v51, 7
  %v53 = vsub.s32 0, %v52
  %v54 = vrot.slane %v49, %v53
  %v64 = vunpack.c.l.b16 %v39
  %v65 = vunpack.c.l.b16 %v40
  %v66 = vunpack.c.l.b16 %v41
  %v67 = vunpack.c.l.b16 %v42
  %v68 = vunpack.c.l.b16 %v43
  %v69 = vunpack.c.l.b16 %v44
  %v70 = vunpack.c.l.b16 %v45
  %v71 = vunpack.c.l.b16 %v46
  %v72 = vpack.c.b16 %v65, %v64
  %v73 = vpack.c.b16 %v67, %v66
  %v74 = vpack.c.b16 %v69, %v68
  %v75 = vpack.c.b16 %v71, %v70
  %v78 = vunpack.c.l.b16 %v47
  %v79 = vunpack.c.l.b16 %v48
  %v80 = vpack.c.b16 %v79, %v78
  %vm82 = vcmask 130048
  %v84 = vsel %vm82, %v72, 0
  %v87 = vsel %vm82, %v73, 0
  %v90 = vsel %vm82, %v74, 0
  %v93 = vsel %vm82, %v75, 0
  %95 = vmatprep.subr.bf16.mxu0 0
  %96 = vmatpush1.bf16.msra.mxu0 %v80
  %97 = vmatprep.subr.bf16.mxu0 0
  %98 = vmatpush1.bf16.msra.mxu0 0
  %99 = vmatprep.subr.bf16.mxu0 0
  %100 = vmatpush1.bf16.msra.mxu0 0
  %101 = vmatprep.subr.bf16.mxu0 0
  %102 = vmatpush1.bf16.msra.mxu0 0
  %103 = vmatprep.subr.bf16.mxu0 0
  %104 = vmatpush1.bf16.msra.mxu0 0
  %105 = vmatprep.subr.bf16.mxu0 0
  %106 = vmatpush1.bf16.msra.mxu0 0
  %107 = vmatprep.subr.bf16.mxu0 0
  %108 = vmatpush1.bf16.msra.mxu0 0
  %109 = vmatprep.subr.bf16.mxu0 0
  %110 = vmatpush1.bf16.msra.mxu0 0
  %111 = vmatprep.subr.bf16.mxu0 0
  %112 = vmatpush1.bf16.msra.mxu0 0
  %113 = vmatprep.subr.bf16.mxu0 0
  %114 = vmatpush1.bf16.msra.mxu0 0
  %115 = vmatprep.subr.bf16.mxu0 0
  %116 = vmatpush1.bf16.msra.mxu0 0
  %117 = vmatprep.subr.bf16.mxu0 0
  %118 = vmatpush1.bf16.msra.mxu0 0
  %119 = vmatprep.subr.bf16.mxu0 0
  %120 = vmatpush1.bf16.msra.mxu0 0
  %121 = vmatprep.subr.bf16.mxu0 0
  %122 = vmatpush1.bf16.msra.mxu0 0
  %123 = vmatprep.subr.bf16.mxu0 0
  %124 = vmatpush1.bf16.msra.mxu0 0
  %125 = vmatprep.subr.bf16.mxu0 0
  %126 = vmatpush1.bf16.msra.mxu0 0
  %127 = vmatprep.mubr.bf16.mxu0 0
  %128 = vmatmul.mubr.bf16.gmra.mrb[0].mxu0 %v84
  %v129 = vpop.f32.mrb[0].mxu0
  %v130 = vadd.f32 %v54, %v129
  %v131 = vpop.f32.mrb[0].mxu0
  %v132 = vpop.f32.mrb[0].mxu0
  %v133 = vadd.f32 %v54, %v132
  %v134 = vpop.f32.mrb[0].mxu0
  %135 = vmatprep.mubr.bf16.mxu0 0
  %136 = vmatmul.mubr.bf16.gmra.mrb[0].mxu0 %v87
  %v137 = vpop.f32.mrb[0].mxu0
  %v138 = vadd.f32 %v54, %v137
  %v139 = vpop.f32.mrb[0].mxu0
  %v140 = vpop.f32.mrb[0].mxu0
  %v141 = vadd.f32 %v54, %v140
  %v142 = vpop.f32.mrb[0].mxu0
  %143 = vmatprep.mubr.bf16.mxu0 0
  %144 = vmatmul.mubr.bf16.gmra.mrb[0].mxu0 %v90
  %v145 = vpop.f32.mrb[0].mxu0
  %v146 = vadd.f32 %v54, %v145
  %v147 = vpop.f32.mrb[0].mxu0
  %v148 = vpop.f32.mrb[0].mxu0
  %v149 = vadd.f32 %v54, %v148
  %v150 = vpop.f32.mrb[0].mxu0
  %151 = vmatprep.mubr.bf16.mxu0 0
  %152 = vmatmul.mubr.bf16.gmra.mrb[0].mxu0 %v93
  %v153 = vpop.f32.mrb[0].mxu0
  %v154 = vadd.f32 %v54, %v153
  %v155 = vpop.f32.mrb[0].mxu0
  %v156 = vpop.f32.mrb[0].mxu0
  %v157 = vadd.f32 %v54, %v156
  %v158 = vpop.f32.mrb[0].mxu0
  %159 = vdwg.mxu0
  %v160 = vmax.f32 %v130, 0.0
  %v161 = vmax.f32 %v133, 0.0
  %v162 = vmax.f32 %v138, 0.0
  %v163 = vmax.f32 %v141, 0.0
  %v164 = vmax.f32 %v146, 0.0
  %v165 = vmax.f32 %v149, 0.0
  %v166 = vmax.f32 %v154, 0.0
  %v167 = vmax.f32 %v157, 0.0
  %v168 = vpack.c.bf16 %v161, %v160
  %v169 = vpack.c.bf16 %v163, %v162
  %v170 = vpack.c.bf16 %v165, %v164
  %v171 = vpack.c.bf16 %v167, %v166
  %v172 = vld [vmem:[%s3] sm:$0xff]
  %v173 = vld [vmem:[%s3 + $0x8] sm:$0xff]
  %v174 = vld [vmem:[%s3 + $0x10] sm:$0xff]
  %v175 = vld [vmem:[%s3 + $0x18] sm:$0xff]
  %v176 = vld [vmem:[%s3 + $0x20] sm:$0xff]
  %v177 = vld [vmem:[%s3 + $0x28] sm:$0xff]
  %v178 = vld [vmem:[%s3 + $0x30] sm:$0xff]
  %v179 = vld [vmem:[%s3 + $0x38] sm:$0xff]
  %v180 = vld [vmem:[%s3 + $0x40] sm:$0xff]
  %v181 = vld [vmem:[%s3 + $0x48] sm:$0xff]
  %v182 = vld [vmem:[%s3 + $0x50] sm:$0xff]
  %v183 = vld [vmem:[%s3 + $0x58] sm:$0xff]
  %v184 = vld [vmem:[%s3 + $0x60] sm:$0xff]
  %v185 = vld [vmem:[%s3 + $0x68] sm:$0xff]
  %v186 = vld [vmem:[%s3 + $0x70] sm:$0xff]
  %v187 = vld [vmem:[%s3 + $0x78] sm:$0xff]
  %v188 = vld [vmem:[%s4] sm:$0x3]
  %v190 = vlaneseq
  %v191 = vshrl.u32 %v190, 7
  %v192 = vsub.s32 0, %v191
  %v193 = vrot.slane %v188, %v192
  %v194 = vlaneseq
  %v195 = vshrl.u32 %v194, 7
  %v196 = vsub.s32 1, %v195
  %v197 = vrot.slane %v188, %v196
  %v216 = vunpack.c.l.b16 %v172
  %v217 = vunpack.c.h.b16 %v172
  %v218 = vunpack.c.l.b16 %v173
  %v219 = vunpack.c.h.b16 %v173
  %v220 = vunpack.c.l.b16 %v174
  %v221 = vunpack.c.h.b16 %v174
  %v222 = vunpack.c.l.b16 %v175
  %v223 = vunpack.c.h.b16 %v175
  %v224 = vunpack.c.l.b16 %v176
  %v225 = vunpack.c.h.b16 %v176
  %v226 = vunpack.c.l.b16 %v177
  %v227 = vunpack.c.h.b16 %v177
  %v228 = vunpack.c.l.b16 %v178
  %v229 = vunpack.c.h.b16 %v178
  %v230 = vunpack.c.l.b16 %v179
  %v231 = vunpack.c.h.b16 %v179
  %v232 = vunpack.c.l.b16 %v180
  %v233 = vunpack.c.h.b16 %v180
  %v234 = vunpack.c.l.b16 %v181
  %v235 = vunpack.c.h.b16 %v181
  %v236 = vunpack.c.l.b16 %v182
  %v237 = vunpack.c.h.b16 %v182
  %v238 = vunpack.c.l.b16 %v183
  %v239 = vunpack.c.h.b16 %v183
  %v240 = vunpack.c.l.b16 %v184
  %v241 = vunpack.c.h.b16 %v184
  %v242 = vunpack.c.l.b16 %v185
  %v243 = vunpack.c.h.b16 %v185
  %v244 = vunpack.c.l.b16 %v186
  %v245 = vunpack.c.h.b16 %v186
  %v246 = vunpack.c.l.b16 %v187
  %v247 = vunpack.c.h.b16 %v187
  %v248 = vpack.c.b16 %v218, %v216
  %v249 = vpack.c.b16 %v219, %v217
  %v250 = vpack.c.b16 %v222, %v220
  %v251 = vpack.c.b16 %v223, %v221
  %v252 = vpack.c.b16 %v226, %v224
  %v253 = vpack.c.b16 %v227, %v225
  %v254 = vpack.c.b16 %v230, %v228
  %v255 = vpack.c.b16 %v231, %v229
  %v256 = vpack.c.b16 %v234, %v232
  %v257 = vpack.c.b16 %v235, %v233
  %v258 = vpack.c.b16 %v238, %v236
  %v259 = vpack.c.b16 %v239, %v237
  %v260 = vpack.c.b16 %v242, %v240
  %v261 = vpack.c.b16 %v243, %v241
  %v262 = vpack.c.b16 %v246, %v244
  %v263 = vpack.c.b16 %v247, %v245
  %280 = vmatprep.subr.bf16.mxu0 %v249
  %281 = vmatpush1.bf16.msra.mxu0 %v248
  %282 = vmatprep.subr.bf16.mxu0 %v251
  %283 = vmatpush1.bf16.msra.mxu0 %v250
  %284 = vmatprep.subr.bf16.mxu0 %v253
  %285 = vmatpush1.bf16.msra.mxu0 %v252
  %286 = vmatprep.subr.bf16.mxu0 %v255
  %287 = vmatpush1.bf16.msra.mxu0 %v254
  %288 = vmatprep.subr.bf16.mxu0 %v257
  %289 = vmatpush1.bf16.msra.mxu0 %v256
  %290 = vmatprep.subr.bf16.mxu0 %v259
  %291 = vmatpush1.bf16.msra.mxu0 %v258
  %292 = vmatprep.subr.bf16.mxu0 %v261
  %293 = vmatpush1.bf16.msra.mxu0 %v260
  %294 = vmatprep.subr.bf16.mxu0 %v263
  %295 = vmatpush1.bf16.msra.mxu0 %v262
  %296 = vmatprep.subr.bf16.mxu0 0
  %297 = vmatpush1.bf16.msra.mxu0 0
  %298 = vmatprep.subr.bf16.mxu0 0
  %299 = vmatpush1.bf16.msra.mxu0 0
  %300 = vmatprep.subr.bf16.mxu0 0
  %301 = vmatpush1.bf16.msra.mxu0 0
  %302 = vmatprep.subr.bf16.mxu0 0
  %303 = vmatpush1.bf16.msra.mxu0 0
  %304 = vmatprep.subr.bf16.mxu0 0
  %305 = vmatpush1.bf16.msra.mxu0 0
  %306 = vmatprep.subr.bf16.mxu0 0
  %307 = vmatpush1.bf16.msra.mxu0 0
  %308 = vmatprep.subr.bf16.mxu0 0
  %309 = vmatpush1.bf16.msra.mxu0 0
  %310 = vmatprep.subr.bf16.mxu0 0
  %311 = vmatpush1.bf16.msra.mxu0 0
  %312 = vmatprep.mubr.bf16.mxu0 0
  %313 = vmatmul.mubr.bf16.gmra.mrb[0].mxu0 %v168
  %v314 = vpop.f32.mrb[0].mxu0
  %v315 = vadd.f32 %v193, %v314
  %v316 = vpop.f32.mrb[0].mxu0
  %v317 = vadd.f32 %v197, %v316
  %v318 = vpop.f32.mrb[0].mxu0
  %v319 = vadd.f32 %v193, %v318
  %v320 = vpop.f32.mrb[0].mxu0
  %v321 = vadd.f32 %v197, %v320
  %322 = vmatprep.mubr.bf16.mxu0 0
  %323 = vmatmul.mubr.bf16.gmra.mrb[0].mxu0 %v169
  %v324 = vpop.f32.mrb[0].mxu0
  %v325 = vadd.f32 %v193, %v324
  %v326 = vpop.f32.mrb[0].mxu0
  %v327 = vadd.f32 %v197, %v326
  %v328 = vpop.f32.mrb[0].mxu0
  %v329 = vadd.f32 %v193, %v328
  %v330 = vpop.f32.mrb[0].mxu0
  %v331 = vadd.f32 %v197, %v330
  %332 = vmatprep.mubr.bf16.mxu0 0
  %333 = vmatmul.mubr.bf16.gmra.mrb[0].mxu0 %v170
  %v334 = vpop.f32.mrb[0].mxu0
  %v335 = vadd.f32 %v193, %v334
  %v336 = vpop.f32.mrb[0].mxu0
  %v337 = vadd.f32 %v197, %v336
  %v338 = vpop.f32.mrb[0].mxu0
  %v339 = vadd.f32 %v193, %v338
  %v340 = vpop.f32.mrb[0].mxu0
  %v341 = vadd.f32 %v197, %v340
  %342 = vmatprep.mubr.bf16.mxu0 0
  %343 = vmatmul.mubr.bf16.gmra.mrb[0].mxu0 %v171
  %v344 = vpop.f32.mrb[0].mxu0
  %v345 = vadd.f32 %v193, %v344
  %v346 = vpop.f32.mrb[0].mxu0
  %v347 = vadd.f32 %v197, %v346
  %v348 = vpop.f32.mrb[0].mxu0
  %v349 = vadd.f32 %v193, %v348
  %v350 = vpop.f32.mrb[0].mxu0
  %v351 = vadd.f32 %v197, %v350
  %352 = vdwg.mxu0
  %v353 = vmax.f32 %v315, 0.0
  %v354 = vmax.f32 %v317, 0.0
  %v355 = vmax.f32 %v319, 0.0
  %v356 = vmax.f32 %v321, 0.0
  %v357 = vmax.f32 %v325, 0.0
  %v358 = vmax.f32 %v327, 0.0
  %v359 = vmax.f32 %v329, 0.0
  %v360 = vmax.f32 %v331, 0.0
  %v361 = vmax.f32 %v335, 0.0
  %v362 = vmax.f32 %v337, 0.0
  %v363 = vmax.f32 %v339, 0.0
  %v364 = vmax.f32 %v341, 0.0
  %v365 = vmax.f32 %v345, 0.0
  %v366 = vmax.f32 %v347, 0.0
  %v367 = vmax.f32 %v349, 0.0
  %v368 = vmax.f32 %v351, 0.0
  %v369 = vpack.c.bf16 %v355, %v353
  %v370 = vpack.c.bf16 %v356, %v354
  %v371 = vpack.c.bf16 %v359, %v357
  %v372 = vpack.c.bf16 %v360, %v358
  %v373 = vpack.c.bf16 %v363, %v361
  %v374 = vpack.c.bf16 %v364, %v362
  %v375 = vpack.c.bf16 %v367, %v365
  %v376 = vpack.c.bf16 %v368, %v366
  %v377 = vld [vmem:[%s5] sm:$0xf]
  %v378 = vld [vmem:[%s5 + $0x4] sm:$0xf]
  %v379 = vld [vmem:[%s5 + $0x8] sm:$0xf]
  %v380 = vld [vmem:[%s5 + $0xc] sm:$0xf]
  %v381 = vld [vmem:[%s5 + $0x10] sm:$0xf]
  %v382 = vld [vmem:[%s5 + $0x14] sm:$0xf]
  %v383 = vld [vmem:[%s5 + $0x18] sm:$0xf]
  %v384 = vld [vmem:[%s5 + $0x1c] sm:$0xf]
  %v385 = vld [vmem:[%s5 + $0x20] sm:$0xf]
  %v386 = vld [vmem:[%s5 + $0x24] sm:$0xf]
  %v387 = vld [vmem:[%s5 + $0x28] sm:$0xf]
  %v388 = vld [vmem:[%s5 + $0x2c] sm:$0xf]
  %v389 = vld [vmem:[%s5 + $0x30] sm:$0xf]
  %v390 = vld [vmem:[%s5 + $0x34] sm:$0xf]
  %v391 = vld [vmem:[%s5 + $0x38] sm:$0xf]
  %v392 = vld [vmem:[%s5 + $0x3c] sm:$0xf]
  %v393 = vld [vmem:[%s5 + $0x40] sm:$0xf]
  %v394 = vld [vmem:[%s5 + $0x44] sm:$0xf]
  %v395 = vld [vmem:[%s5 + $0x48] sm:$0xf]
  %v396 = vld [vmem:[%s5 + $0x4c] sm:$0xf]
  %v397 = vld [vmem:[%s5 + $0x50] sm:$0xf]
  %v398 = vld [vmem:[%s5 + $0x54] sm:$0xf]
  %v399 = vld [vmem:[%s5 + $0x58] sm:$0xf]
  %v400 = vld [vmem:[%s5 + $0x5c] sm:$0xf]
  %v401 = vld [vmem:[%s5 + $0x60] sm:$0xf]
  %v402 = vld [vmem:[%s5 + $0x64] sm:$0xf]
  %v403 = vld [vmem:[%s5 + $0x68] sm:$0xf]
  %v404 = vld [vmem:[%s5 + $0x6c] sm:$0xf]
  %v405 = vld [vmem:[%s5 + $0x70] sm:$0xf]
  %v406 = vld [vmem:[%s5 + $0x74] sm:$0xf]
  %v407 = vld [vmem:[%s5 + $0x78] sm:$0xf]
  %v408 = vld [vmem:[%s5 + $0x7c] sm:$0xf]
  %v409 = vld [vmem:[%s6] sm:$0x1]
  %v411 = vlaneseq
  %v412 = vshrl.u32 %v411, 7
  %v413 = vsub.s32 0, %v412
  %v414 = vrot.slane %v409, %v413
  %v448 = vunpack.c.l.b16 %v377
  %v449 = vunpack.c.l.b16 %v378
  %v450 = vunpack.c.l.b16 %v379
  %v451 = vunpack.c.l.b16 %v380
  %v452 = vunpack.c.l.b16 %v381
  %v453 = vunpack.c.l.b16 %v382
  %v454 = vunpack.c.l.b16 %v383
  %v455 = vunpack.c.l.b16 %v384
  %v456 = vunpack.c.l.b16 %v385
  %v457 = vunpack.c.l.b16 %v386
  %v458 = vunpack.c.l.b16 %v387
  %v459 = vunpack.c.l.b16 %v388
  %v460 = vunpack.c.l.b16 %v389
  %v461 = vunpack.c.l.b16 %v390
  %v462 = vunpack.c.l.b16 %v391
  %v463 = vunpack.c.l.b16 %v392
  %v464 = vunpack.c.l.b16 %v393
  %v465 = vunpack.c.l.b16 %v394
  %v466 = vunpack.c.l.b16 %v395
  %v467 = vunpack.c.l.b16 %v396
  %v468 = vunpack.c.l.b16 %v397
  %v469 = vunpack.c.l.b16 %v398
  %v470 = vunpack.c.l.b16 %v399
  %v471 = vunpack.c.l.b16 %v400
  %v472 = vunpack.c.l.b16 %v401
  %v473 = vunpack.c.l.b16 %v402
  %v474 = vunpack.c.l.b16 %v403
  %v475 = vunpack.c.l.b16 %v404
  %v476 = vunpack.c.l.b16 %v405
  %v477 = vunpack.c.l.b16 %v406
  %v478 = vunpack.c.l.b16 %v407
  %v479 = vunpack.c.l.b16 %v408
  %v480 = vpack.c.b16 %v449, %v448
  %v481 = vpack.c.b16 %v451, %v450
  %v482 = vpack.c.b16 %v453, %v452
  %v483 = vpack.c.b16 %v455, %v454
  %v484 = vpack.c.b16 %v457, %v456
  %v485 = vpack.c.b16 %v459, %v458
  %v486 = vpack.c.b16 %v461, %v460
  %v487 = vpack.c.b16 %v463, %v462
  %v488 = vpack.c.b16 %v465, %v464
  %v489 = vpack.c.b16 %v467, %v466
  %v490 = vpack.c.b16 %v469, %v468
  %v491 = vpack.c.b16 %v471, %v470
  %v492 = vpack.c.b16 %v473, %v472
  %v493 = vpack.c.b16 %v475, %v474
  %v494 = vpack.c.b16 %v477, %v476
  %v495 = vpack.c.b16 %v479, %v478
  %512 = vmatprep.subr.bf16.mxu0 0
  %513 = vmatpush1.bf16.msra.mxu0 %v480
  %514 = vmatprep.subr.bf16.mxu0 0
  %515 = vmatpush1.bf16.msra.mxu0 %v481
  %516 = vmatprep.subr.bf16.mxu0 0
  %517 = vmatpush1.bf16.msra.mxu0 %v482
  %518 = vmatprep.subr.bf16.mxu0 0
  %519 = vmatpush1.bf16.msra.mxu0 %v483
  %520 = vmatprep.subr.bf16.mxu0 0
  %521 = vmatpush1.bf16.msra.mxu0 %v484
  %522 = vmatprep.subr.bf16.mxu0 0
  %523 = vmatpush1.bf16.msra.mxu0 %v485
  %524 = vmatprep.subr.bf16.mxu0 0
  %525 = vmatpush1.bf16.msra.mxu0 %v486
  %526 = vmatprep.subr.bf16.mxu0 0
  %527 = vmatpush1.bf16.msra.mxu0 %v487
  %528 = vmatprep.subr.bf16.mxu0 0
  %529 = vmatpush1.bf16.msra.mxu0 %v488
  %530 = vmatprep.subr.bf16.mxu0 0
  %531 = vmatpush1.bf16.msra.mxu0 %v489
  %532 = vmatprep.subr.bf16.mxu0 0
  %533 = vmatpush1.bf16.msra.mxu0 %v490
  %534 = vmatprep.subr.bf16.mxu0 0
  %535 = vmatpush1.bf16.msra.mxu0 %v491
  %536 = vmatprep.subr.bf16.mxu0 0
  %537 = vmatpush1.bf16.msra.mxu0 %v492
  %538 = vmatprep.subr.bf16.mxu0 0
  %539 = vmatpush1.bf16.msra.mxu0 %v493
  %540 = vmatprep.subr.bf16.mxu0 0
  %541 = vmatpush1.bf16.msra.mxu0 %v494
  %542 = vmatprep.subr.bf16.mxu0 0
  %543 = vmatpush1.bf16.msra.mxu0 %v495
  %544 = vmatprep.mubr.bf16.mxu0 %v370
  %545 = vmatmul.mubr.bf16.gmra.mrb[0].mxu0 %v369
  %v546 = vpop.f32.mrb[0].mxu0
  %v547 = vadd.f32 %v414, %v546
  %v548 = vpop.f32.mrb[0].mxu0
  %v549 = vpop.f32.mrb[0].mxu0
  %v550 = vadd.f32 %v414, %v549
  %v551 = vpop.f32.mrb[0].mxu0
  %552 = vmatprep.mubr.bf16.mxu0 %v372
  %553 = vmatmul.mubr.bf16.gmra.mrb[0].mxu0 %v371
  %v554 = vpop.f32.mrb[0].mxu0
  %v555 = vadd.f32 %v414, %v554
  %v556 = vpop.f32.mrb[0].mxu0
  %v557 = vpop.f32.mrb[0].mxu0
  %v558 = vadd.f32 %v414, %v557
  %v559 = vpop.f32.mrb[0].mxu0
  %560 = vmatprep.mubr.bf16.mxu0 %v374
  %561 = vmatmul.mubr.bf16.gmra.mrb[0].mxu0 %v373
  %v562 = vpop.f32.mrb[0].mxu0
  %v563 = vadd.f32 %v414, %v562
  %v564 = vpop.f32.mrb[0].mxu0
  %v565 = vpop.f32.mrb[0].mxu0
  %v566 = vadd.f32 %v414, %v565
  %v567 = vpop.f32.mrb[0].mxu0
  %568 = vmatprep.mubr.bf16.mxu0 %v376
  %569 = vmatmul.mubr.bf16.gmra.mrb[0].mxu0 %v375
  %v570 = vpop.f32.mrb[0].mxu0
  %v571 = vadd.f32 %v414, %v570
  %v572 = vpop.f32.mrb[0].mxu0
  %v573 = vpop.f32.mrb[0].mxu0
  %v574 = vadd.f32 %v414, %v573
  %v575 = vpop.f32.mrb[0].mxu0
  %576 = vdwg.mxu0
  %v577 = vmax.f32 %v547, 0.0
  %v578 = vmax.f32 %v550, 0.0
  %v579 = vmax.f32 %v555, 0.0
  %v580 = vmax.f32 %v558, 0.0
  %v581 = vmax.f32 %v563, 0.0
  %v582 = vmax.f32 %v566, 0.0
  %v583 = vmax.f32 %v571, 0.0
  %v584 = vmax.f32 %v574, 0.0
  %v585 = vpack.c.bf16 %v578, %v577
  %v586 = vpack.c.bf16 %v580, %v579
  %v587 = vpack.c.bf16 %v582, %v581
  %v588 = vpack.c.bf16 %v584, %v583
  %v589 = vld [vmem:[%s7] sm:$0xf]
  %v590 = vld [vmem:[%s7 + $0x4] sm:$0xf]
  %v591 = vld [vmem:[%s7 + $0x8] sm:$0xf]
  %v592 = vld [vmem:[%s7 + $0xc] sm:$0xf]
  %v593 = vld [vmem:[%s7 + $0x10] sm:$0xf]
  %v594 = vld [vmem:[%s7 + $0x14] sm:$0xf]
  %v595 = vld [vmem:[%s7 + $0x18] sm:$0xf]
  %v596 = vld [vmem:[%s7 + $0x1c] sm:$0xf]
  %v597 = vld [vmem:[%s7 + $0x20] sm:$0xf]
  %v598 = vld [vmem:[%s7 + $0x24] sm:$0xf]
  %v599 = vld [vmem:[%s7 + $0x28] sm:$0xf]
  %v600 = vld [vmem:[%s7 + $0x2c] sm:$0xf]
  %v601 = vld [vmem:[%s7 + $0x30] sm:$0xf]
  %v602 = vld [vmem:[%s7 + $0x34] sm:$0xf]
  %v603 = vld [vmem:[%s7 + $0x38] sm:$0xf]
  %v604 = vld [vmem:[%s7 + $0x3c] sm:$0xf]
  %v605 = vld [vmem:[%s8] sm:$0x1]
  %v607 = vlaneseq
  %v608 = vshrl.u32 %v607, 7
  %v609 = vsub.s32 0, %v608
  %v610 = vrot.slane %v605, %v609
  %v628 = vunpack.c.l.b16 %v589
  %v629 = vunpack.c.l.b16 %v590
  %v630 = vunpack.c.l.b16 %v591
  %v631 = vunpack.c.l.b16 %v592
  %v632 = vunpack.c.l.b16 %v593
  %v633 = vunpack.c.l.b16 %v594
  %v634 = vunpack.c.l.b16 %v595
  %v635 = vunpack.c.l.b16 %v596
  %v636 = vunpack.c.l.b16 %v597
  %v637 = vunpack.c.l.b16 %v598
  %v638 = vunpack.c.l.b16 %v599
  %v639 = vunpack.c.l.b16 %v600
  %v640 = vunpack.c.l.b16 %v601
  %v641 = vunpack.c.l.b16 %v602
  %v642 = vunpack.c.l.b16 %v603
  %v643 = vunpack.c.l.b16 %v604
  %v644 = vpack.c.b16 %v629, %v628
  %v645 = vpack.c.b16 %v631, %v630
  %v646 = vpack.c.b16 %v633, %v632
  %v647 = vpack.c.b16 %v635, %v634
  %v648 = vpack.c.b16 %v637, %v636
  %v649 = vpack.c.b16 %v639, %v638
  %v650 = vpack.c.b16 %v641, %v640
  %v651 = vpack.c.b16 %v643, %v642
  %660 = vmatprep.subr.bf16.mxu0 0
  %661 = vmatpush1.bf16.msra.mxu0 %v644
  %662 = vmatprep.subr.bf16.mxu0 0
  %663 = vmatpush1.bf16.msra.mxu0 %v645
  %664 = vmatprep.subr.bf16.mxu0 0
  %665 = vmatpush1.bf16.msra.mxu0 %v646
  %666 = vmatprep.subr.bf16.mxu0 0
  %667 = vmatpush1.bf16.msra.mxu0 %v647
  %668 = vmatprep.subr.bf16.mxu0 0
  %669 = vmatpush1.bf16.msra.mxu0 %v648
  %670 = vmatprep.subr.bf16.mxu0 0
  %671 = vmatpush1.bf16.msra.mxu0 %v649
  %672 = vmatprep.subr.bf16.mxu0 0
  %673 = vmatpush1.bf16.msra.mxu0 %v650
  %674 = vmatprep.subr.bf16.mxu0 0
  %675 = vmatpush1.bf16.msra.mxu0 %v651
  %676 = vmatprep.subr.bf16.mxu0 0
  %677 = vmatpush1.bf16.msra.mxu0 0
  %678 = vmatprep.subr.bf16.mxu0 0
  %679 = vmatpush1.bf16.msra.mxu0 0
  %680 = vmatprep.subr.bf16.mxu0 0
  %681 = vmatpush1.bf16.msra.mxu0 0
  %682 = vmatprep.subr.bf16.mxu0 0
  %683 = vmatpush1.bf16.msra.mxu0 0
  %684 = vmatprep.subr.bf16.mxu0 0
  %685 = vmatpush1.bf16.msra.mxu0 0
  %686 = vmatprep.subr.bf16.mxu0 0
  %687 = vmatpush1.bf16.msra.mxu0 0
  %688 = vmatprep.subr.bf16.mxu0 0
  %689 = vmatpush1.bf16.msra.mxu0 0
  %690 = vmatprep.subr.bf16.mxu0 0
  %691 = vmatpush1.bf16.msra.mxu0 0
  %692 = vmatprep.mubr.bf16.mxu0 0
  %693 = vmatmul.mubr.bf16.gmra.mrb[0].mxu0 %v585
  %v694 = vpop.f32.mrb[0].mxu0
  %v695 = vadd.f32 %v610, %v694
  %v696 = vpop.f32.mrb[0].mxu0
  %v697 = vpop.f32.mrb[0].mxu0
  %v698 = vadd.f32 %v610, %v697
  %v699 = vpop.f32.mrb[0].mxu0
  %700 = vmatprep.mubr.bf16.mxu0 0
  %701 = vmatmul.mubr.bf16.gmra.mrb[0].mxu0 %v586
  %v702 = vpop.f32.mrb[0].mxu0
  %v703 = vadd.f32 %v610, %v702
  %v704 = vpop.f32.mrb[0].mxu0
  %v705 = vpop.f32.mrb[0].mxu0
  %v706 = vadd.f32 %v610, %v705
  %v707 = vpop.f32.mrb[0].mxu0
  %708 = vmatprep.mubr.bf16.mxu0 0
  %709 = vmatmul.mubr.bf16.gmra.mrb[0].mxu0 %v587
  %v710 = vpop.f32.mrb[0].mxu0
  %v711 = vadd.f32 %v610, %v710
  %v712 = vpop.f32.mrb[0].mxu0
  %v713 = vpop.f32.mrb[0].mxu0
  %v714 = vadd.f32 %v610, %v713
  %v715 = vpop.f32.mrb[0].mxu0
  %716 = vmatprep.mubr.bf16.mxu0 0
  %717 = vmatmul.mubr.bf16.gmra.mrb[0].mxu0 %v588
  %v718 = vpop.f32.mrb[0].mxu0
  %v719 = vadd.f32 %v610, %v718
  %v720 = vpop.f32.mrb[0].mxu0
  %v721 = vpop.f32.mrb[0].mxu0
  %v722 = vadd.f32 %v610, %v721
  %v723 = vpop.f32.mrb[0].mxu0
  %724 = vdwg.mxu0
  %v725 = vmax.f32 %v695, 0.0
  %v726 = vmax.f32 %v698, 0.0
  %v727 = vmax.f32 %v703, 0.0
  %v728 = vmax.f32 %v706, 0.0
  %v729 = vmax.f32 %v711, 0.0
  %v730 = vmax.f32 %v714, 0.0
  %v731 = vmax.f32 %v719, 0.0
  %v732 = vmax.f32 %v722, 0.0
  %v733 = vpack.c.bf16 %v726, %v725
  %v734 = vpack.c.bf16 %v728, %v727
  %v735 = vpack.c.bf16 %v730, %v729
  %v736 = vpack.c.bf16 %v732, %v731
  %v737 = vld [vmem:[%s9] sm:$0xf]
  %v738 = vld [vmem:[%s9 + $0x4] sm:$0xf]
  %v739 = vld [vmem:[%s9 + $0x8] sm:$0xf]
  %v740 = vld [vmem:[%s9 + $0xc] sm:$0xf]
  %v741 = vld [vmem:[%s9 + $0x10] sm:$0xf]
  %v742 = vld [vmem:[%s9 + $0x14] sm:$0xf]
  %v743 = vld [vmem:[%s9 + $0x18] sm:$0xf]
  %v744 = vld [vmem:[%s9 + $0x1c] sm:$0xf]
  %v745 = vld [vmem:[%s10] sm:$0x1]
  %v747 = vlaneseq
  %v748 = vshrl.u32 %v747, 7
  %v749 = vsub.s32 0, %v748
  %v750 = vrot.slane %v745, %v749
  %v760 = vunpack.c.l.b16 %v737
  %v761 = vunpack.c.l.b16 %v738
  %v762 = vunpack.c.l.b16 %v739
  %v763 = vunpack.c.l.b16 %v740
  %v764 = vunpack.c.l.b16 %v741
  %v765 = vunpack.c.l.b16 %v742
  %v766 = vunpack.c.l.b16 %v743
  %v767 = vunpack.c.l.b16 %v744
  %v768 = vpack.c.b16 %v761, %v760
  %v769 = vpack.c.b16 %v763, %v762
  %v770 = vpack.c.b16 %v765, %v764
  %v771 = vpack.c.b16 %v767, %v766
  %vm776 = vcmask 523264
  %v778 = vsel %vm776, %v733, 0
  %v781 = vsel %vm776, %v734, 0
  %v784 = vsel %vm776, %v735, 0
  %v787 = vsel %vm776, %v736, 0
  %789 = vmatprep.subr.bf16.mxu0 0
  %790 = vmatpush1.bf16.msra.mxu0 %v768
  %791 = vmatprep.subr.bf16.mxu0 0
  %792 = vmatpush1.bf16.msra.mxu0 %v769
  %793 = vmatprep.subr.bf16.mxu0 0
  %794 = vmatpush1.bf16.msra.mxu0 %v770
  %795 = vmatprep.subr.bf16.mxu0 0
  %796 = vmatpush1.bf16.msra.mxu0 %v771
  %797 = vmatprep.subr.bf16.mxu0 0
  %798 = vmatpush1.bf16.msra.mxu0 0
  %799 = vmatprep.subr.bf16.mxu0 0
  %800 = vmatpush1.bf16.msra.mxu0 0
  %801 = vmatprep.subr.bf16.mxu0 0
  %802 = vmatpush1.bf16.msra.mxu0 0
  %803 = vmatprep.subr.bf16.mxu0 0
  %804 = vmatpush1.bf16.msra.mxu0 0
  %805 = vmatprep.subr.bf16.mxu0 0
  %806 = vmatpush1.bf16.msra.mxu0 0
  %807 = vmatprep.subr.bf16.mxu0 0
  %808 = vmatpush1.bf16.msra.mxu0 0
  %809 = vmatprep.subr.bf16.mxu0 0
  %810 = vmatpush1.bf16.msra.mxu0 0
  %811 = vmatprep.subr.bf16.mxu0 0
  %812 = vmatpush1.bf16.msra.mxu0 0
  %813 = vmatprep.subr.bf16.mxu0 0
  %814 = vmatpush1.bf16.msra.mxu0 0
  %815 = vmatprep.subr.bf16.mxu0 0
  %816 = vmatpush1.bf16.msra.mxu0 0
  %817 = vmatprep.subr.bf16.mxu0 0
  %818 = vmatpush1.bf16.msra.mxu0 0
  %819 = vmatprep.subr.bf16.mxu0 0
  %820 = vmatpush1.bf16.msra.mxu0 0
  %821 = vmatprep.mubr.bf16.mxu0 0
  %822 = vmatmul.mubr.bf16.gmra.mrb[0].mxu0 %v778
  %v823 = vpop.f32.mrb[0].mxu0
  %v824 = vadd.f32 %v750, %v823
  %v825 = vpop.f32.mrb[0].mxu0
  %v826 = vpop.f32.mrb[0].mxu0
  %v827 = vadd.f32 %v750, %v826
  %v828 = vpop.f32.mrb[0].mxu0
  %829 = vmatprep.mubr.bf16.mxu0 0
  %830 = vmatmul.mubr.bf16.gmra.mrb[0].mxu0 %v781
  %v831 = vpop.f32.mrb[0].mxu0
  %v832 = vadd.f32 %v750, %v831
  %v833 = vpop.f32.mrb[0].mxu0
  %v834 = vpop.f32.mrb[0].mxu0
  %v835 = vadd.f32 %v750, %v834
  %v836 = vpop.f32.mrb[0].mxu0
  %837 = vmatprep.mubr.bf16.mxu0 0
  %838 = vmatmul.mubr.bf16.gmra.mrb[0].mxu0 %v784
  %v839 = vpop.f32.mrb[0].mxu0
  %v840 = vadd.f32 %v750, %v839
  %v841 = vpop.f32.mrb[0].mxu0
  %v842 = vpop.f32.mrb[0].mxu0
  %v843 = vadd.f32 %v750, %v842
  %v844 = vpop.f32.mrb[0].mxu0
  %845 = vmatprep.mubr.bf16.mxu0 0
  %846 = vmatmul.mubr.bf16.gmra.mrb[0].mxu0 %v787
  %v847 = vpop.f32.mrb[0].mxu0
  %v848 = vadd.f32 %v750, %v847
  %v849 = vpop.f32.mrb[0].mxu0
  %v850 = vpop.f32.mrb[0].mxu0
  %v851 = vadd.f32 %v750, %v850
  %v852 = vpop.f32.mrb[0].mxu0
  %853 = vdwg.mxu0
  %v854 = vtanh.pop %v824
  %v855 = vtanh.pop %v827
  %v856 = vtanh.pop %v832
  %v857 = vtanh.pop %v835
  %v858 = vtanh.pop %v840
  %v859 = vtanh.pop %v843
  %v860 = vtanh.pop %v848
  %v861 = vtanh.pop %v851
  %vm862 = vcmask 64512
  %863 = vst.msk [vmem:[%s11] sm:$0xff] %vm862, %v854
  %864 = vst.msk [vmem:[%s11 + $0x8] sm:$0xff] %vm862, %v855
  %865 = vst.msk [vmem:[%s11 + $0x10] sm:$0xff] %vm862, %v856
  %866 = vst.msk [vmem:[%s11 + $0x18] sm:$0xff] %vm862, %v857
  %867 = vst.msk [vmem:[%s11 + $0x20] sm:$0xff] %vm862, %v858
  %868 = vst.msk [vmem:[%s11 + $0x28] sm:$0xff] %vm862, %v859
  %869 = vst.msk [vmem:[%s11 + $0x30] sm:$0xff] %vm862, %v860
  %870 = vst.msk [vmem:[%s11 + $0x38] sm:$0xff] %vm862, %v861
  // Predicated region
  $region46: #{rnn_net_2_forward.1} parent=0 // pred_check
    _
  $region47: #{rnn_net_2_forward.1} parent=0 // pred_check_branch
    %872 = sbr.rel (0) target = $region49
  $region48: #{rnn_net_2_forward.1} parent=0 // pred_region
    _
  $region49: #{rnn_net_2_forward.1} parent=0 // pred_fallthru
    _
  // Predicated region
  $region50: #{rnn_net_2_forward.1} parent=0 // pred_check
    _
  $region51: #{rnn_net_2_forward.1} parent=0 // pred_check_branch
    %874 = sbr.rel (0) target = $region53
  $region52: #{rnn_net_2_forward.1} parent=0 // pred_region
    _
  $region53: #{rnn_net_2_forward.1} parent=0 // pred_fallthru
    _

</llo_original>
